<compile_context>
chip_gen: v6e
topology: v6e:2x2x1
jax: 0.10.0
libtpu: 0.0.40
codegen_flags: <defaults>
</compile_context>

<pallas_src>
import jax
import jax.numpy as jnp
from jax.experimental import pallas as pl
from jax.experimental.pallas import tpu as pltpu


_PERM = (0, 2, 1, 3)          # channel reorder performed by ReCodeAlphabet.forward
_LANE = 128
_SUBLANE = 8
# ~4 MiB per block: in + out, double-buffered => ~16 MiB resident, comfortably
# under the 32 MiB scoped-VMEM default on v5e/v6e/v7x (64 MiB physical on v7x).
_DEFAULT_TARGET_BLOCK_BYTES = 4 * 1024 * 1024


# --------------------------------- kernels --------------------------------- #

def _copy_kernel(x_ref, o_ref):
    # Pure copy: the channel permutation is expressed in the input index_map,
    # so the DMA performs it; the body is a single full-tile load + store.
    o_ref[...] = x_ref[...]


def _swap_kernel(x_ref, o_ref):
    # Fallback (lane length not a multiple of 128): block covers the full
    # (C, L) plane, so the sublane reorder happens in-register.
    x = x_ref[...]                                            # (BN, C, L)
    o_ref[...] = jnp.concatenate(
        [x[:, 0:1, :], x[:, 2:3, :], x[:, 1:2, :], x[:, 3:4, :]], axis=1)


# ----------------------------- tile selection ------------------------------ #

def _largest_dividing_tile(length, unit, max_elems):
    """Largest multiple of `unit` that divides `length` and is <= max_elems."""
    cap = min(length, max(unit, max_elems))
    t = (cap // unit) * unit
    while t >= unit:
        if length % t == 0:
            return t
        t -= unit
    return None


def _choose_row_block(n, max_rows):
    """Rows per block: the full batch, or a multiple of 8 (ideally dividing n)."""
    if n <= max_rows or n <= _SUBLANE:
        return n
    cap = max(_SUBLANE, (max_rows // _SUBLANE) * _SUBLANE)
    t = cap
    while t >= _SUBLANE:
        if n % t == 0:
            return t
        t -= _SUBLANE
    return cap  # does not divide n; grid uses cdiv + edge-block masking


# ------------------------------ pallas callers ----------------------------- #

def _recode_flat(x_flat, n, c, l, target_bytes):
    """Fast path: x viewed as (N, C*L), permutation done by the input index_map."""
    itemsize = x_flat.dtype.itemsize
    tl = _largest_dividing_tile(l, _LANE, max(_LANE, target_bytes // itemsize))
    lblk = l // tl
    bn = _choose_row_block(n, max(1, target_bytes // (tl * itemsize)))
    rblk = pl.cdiv(n, bn)

    # Put the larger of (row blocks, lane blocks) first so the leading
    # "parallel" axis shards evenly across TensorCores on v7x.
    rows_first = rblk >= lblk
    grid = (rblk, lblk, 4) if rows_first else (lblk, rblk, 4)

    def _ij(g0, g1):
        return (g0, g1) if rows_first else (g1, g0)

    def in_index(g0, g1, ch):
        i, j = _ij(g0, g1)
        src = jnp.where(ch == 1, 2, jnp.where(ch == 2, 1, ch))   # 1 <-> 2 swap
        return (i, src * lblk + j)

    def out_index(g0, g1, ch):
        i, j = _ij(g0, g1)
        return (i, ch * lblk + j)

    return pl.pallas_call(
        _copy_kernel,
        out_shape=jax.ShapeDtypeStruct((n, 4 * l), x_flat.dtype),
        grid=grid,
        in_specs=[pl.BlockSpec((bn, tl), in_index)],
        out_specs=pl.BlockSpec((bn, tl), out_index),
        compiler_params=pltpu.CompilerParams(
            dimension_semantics=("parallel", "parallel", "parallel")),
    )(x_flat)


def _recode_smalllane(x3, n, c, l, target_bytes):
    """Fallback for L not a multiple of 128: full (C, L) per block (layout-legal)."""
    itemsize = x3.dtype.itemsize
    bn = _choose_row_block(n, max(1, target_bytes // max(1, c * l * itemsize)))
    grid = (pl.cdiv(n, bn),)
    return pl.pallas_call(
        _swap_kernel,
        out_shape=jax.ShapeDtypeStruct((n, 4, l), x3.dtype),
        grid=grid,
        in_specs=[pl.BlockSpec((bn, c, l), lambda i: (i, 0, 0))],
        out_specs=pl.BlockSpec((bn, 4, l), lambda i: (i, 0, 0)),
        compiler_params=pltpu.CompilerParams(
            dimension_semantics=("parallel",)),
    )(x3)


# --------------------------------- wrapper --------------------------------- #

def recode_alphabet(x, target_block_bytes=_DEFAULT_TARGET_BLOCK_BYTES):
    """out[:, c, ...] = x[:, (0,2,1,3)[c], ...]   (ReCodeAlphabet.forward)."""
    n = int(x.shape[0])
    c = int(x.shape[1])
    trailing = tuple(int(d) for d in x.shape[2:])
    if c < 4:
        raise ValueError("ReCodeAlphabet expects at least 4 channels")

    l = 1
    for d in trailing:
        l *= d
    l = max(l, 1)
    itemsize = jnp.dtype(x.dtype).itemsize

    if l % _LANE == 0:
        # Fast path: free reshape to (N, C*L), permutation in the index_map.
        x_flat = x.reshape(n, c * l)
        out = _recode_flat(x_flat, n, c, l, target_block_bytes)
        return out.reshape((n, 4) + trailing)

    x3 = x.reshape(n, c, l)
    if c * l * itemsize <= target_block_bytes:
        # Small unaligned lane length: one full-(C, L) block per row group.
        out3 = _recode_smalllane(x3, n, c, l, target_block_bytes)
    else:
        # Large unaligned lane length: pad to the next 128 multiple so blocks
        # stay bounded (v7x VMEM) and stores stay unmasked, then trim.
        lp = ((l + _LANE - 1) // _LANE) * _LANE
        xp = jnp.pad(x3, ((0, 0), (0, 0), (0, lp - l)))
        outp = _recode_flat(xp.reshape(n, c * lp), n, c, lp, target_block_bytes)
        out3 = outp.reshape(n, 4, lp)[:, :, :l]
    return out3.reshape((n, 4) + trailing)


# ----------------------------------- main ----------------------------------- #

if __name__ == "__main__":
    key = jax.random.PRNGKey(0)
    keys = jax.random.split(key, 8)
    perm = jnp.array(_PERM)

    fwd = jax.jit(recode_alphabet, static_argnames=("target_block_bytes",))

    cases = [
        # (input, kwargs)
        (jax.random.normal(keys[0], (2, 4, 256), jnp.float32), {}),           # fast path
        (jax.random.normal(keys[1], (2, 4, 100), jnp.float32), {}),           # non-128 lane fallback
        (jax.random.normal(keys[2], (2, 4, 8, 16), jnp.float32), {}),         # arbitrary trailing dims
        (jax.random.normal(keys[3], (16, 4, 1024), jnp.float32),
         dict(target_block_bytes=32 * 1024)),                                 # multiple row blocks
        (jax.random.normal(keys[4], (8, 4, 2048), jnp.float32),
         dict(target_block_bytes=4 * 1024)),                                  # multiple lane blocks (lanes lead)
        (jax.random.normal(keys[5], (2, 6, 256), jnp.float32), {}),           # C > 4: extra channels ignored
        (jax.random.normal(keys[6], (2, 4, 256), jnp.float32).astype(jnp.bfloat16), {}),
    ]

    for x, kwargs in cases:
        y = jax.block_until_ready(fwd(x, **kwargs))
        expect = jnp.take(x, perm, axis=1)
        assert y.shape == expect.shape, (y.shape, expect.shape)
        assert jnp.array_equal(y, expect), f"mismatch for input shape {x.shape}"

    print("KERNEL_OK")
</pallas_src>

<mosaic_0001>
module attributes {stable_mosaic.version = 11 : i64} {
  func.func @_copy_kernel(%arg0: i32, %arg1: i32, %arg2: i32, %arg3: memref<2x256xf32, #tpu.memory_space<vmem>>, %arg4: memref<2x256xf32, #tpu.memory_space<vmem>>) attributes {dimension_semantics = [#tpu.dimension_semantics<parallel>, #tpu.dimension_semantics<parallel>, #tpu.dimension_semantics<parallel>], iteration_bounds = array<i64: 1, 1, 4>, scalar_prefetch = 0 : i64, scratch_operands = 0 : i64, tpu.core_type = #tpu.core_type<tc>, window_params = [{transform_indices = @transform_0, window_bounds = array<i64: 2, 256>}, {transform_indices = @transform_1, window_bounds = array<i64: 2, 256>}]} {
    %c0 = arith.constant 0 : index
    %c0_0 = arith.constant 0 : index
    %0 = vector.load %arg3[%c0, %c0_0] : memref<2x256xf32, #tpu.memory_space<vmem>>, vector<2x256xf32>
    %c0_1 = arith.constant 0 : index
    %c0_2 = arith.constant 0 : index
    %1 = vector.load %arg4[%c0_1, %c0_2] : memref<2x256xf32, #tpu.memory_space<vmem>>, vector<2x256xf32>
    tpu.vector_store %arg4[%c0_1, %c0_2], %0 {strides = array<i32>} : memref<2x256xf32, #tpu.memory_space<vmem>>, vector<2x256xf32>,
    return
  }
  func.func @transform_0(%arg0: i32, %arg1: i32, %arg2: i32) -> (i32, i32) {
    %c1_i32 = arith.constant 1 : i32
    %0 = arith.cmpi eq, %arg2, %c1_i32 : i32
    %c2_i32 = arith.constant 2 : i32
    %1 = arith.cmpi eq, %arg2, %c2_i32 : i32
    %c1_i32_0 = arith.constant 1 : i32
    %2 = arith.select %1, %c1_i32_0, %arg2 : i32
    %c2_i32_1 = arith.constant 2 : i32
    %3 = arith.select %0, %c2_i32_1, %2 : i32
    %c1_i32_2 = arith.constant 1 : i32
    %4 = arith.muli %3, %c1_i32_2 : i32
    %5 = arith.addi %4, %arg1 : i32
    %c0_i32 = arith.constant 0 : i32
    return %arg0, %5 : i32, i32
  }
  func.func @transform_1(%arg0: i32, %arg1: i32, %arg2: i32) -> (i32, i32) {
    %c1_i32 = arith.constant 1 : i32
    %0 = arith.muli %arg2, %c1_i32 : i32
    %1 = arith.addi %0, %arg1 : i32
    %c0_i32 = arith.constant 0 : i32
    return %arg0, %1 : i32, i32
  }
}

</mosaic_0001>

<llo_original>
// kernel: recode_alphabet.1
$region0: #{recode_alphabet.1}
  #allocation0 [shape = 'u32[]', space=smem, size = 0x4, offset = 0x4, fixed_abs, tag = 'smem constant byte address 0x4 - core index']
  #allocation1 [shape = 'u32[144,128]{1,0:T(1,128)}', space=vmem, size = 0x12000, scoped, tag = 'internal scratch']
  %s0 = inlined_call_operand.vmem [shape: f32[2,1024], index: 0, kind: input, shape index: {}]
  %s1 = inlined_call_operand.vmem [shape: f32[2,1024], index: 1, kind: output, shape index: {}]
  %s2 = sld [smem:[#allocation0]]
  $region37: #{recode_alphabet.1} parent=0
    _
  %s4 = ssub.s32 1, %s2
  %s5 = scalar_select 0, %s4, %s2
  loop: start=0, step=1, limit=6
  $region2: #{recode_alphabet.1} parent=0 // loop_pre_header
    _
  $region3: #{recode_alphabet.1} parent=0 // loop_header
    %s7 = sphi 0, %s11
    %p8 = scmp.ge.s32.totalorder %s7, 6
    %s14 = sphi 0, %s33
    %s15 = sphi 0, %s29
    %s16 = sphi 0, %s25
    %s17 = sphi 0, %s14
    %s18 = sphi 0, %s15
    %s19 = sphi 0, %s16
    %s20 = sphi 0, %s17
    %s21 = sphi 0, %s18
    %s22 = sphi 0, %s19
    %s48 = sphi 0, %s50
    %s51 = sphi 0, %s48
    %s52 = sphi 0, %s51
    %s68 = sphi 0, %s52
    %s78 = sphi 0, %s80
    %s81 = sphi 0, %s78
    %s82 = sphi 0, %s81
    %s98 = sphi 0, %s82
  $region4: #{recode_alphabet.1} parent=0 // loop_header_branch
    %10 = sbr.rel (%p8) target = $region8
  $region5: #{recode_alphabet.1} parent=0 // loop_body
    %s12 = ssub.s32 %s7, 1
    %s13 = ssub.s32 %s7, 2
    %s23 = sadd.s32 1, %s16
    %p24 = scmp.ge.s32.totalorder %s23, 4
    %s25 = scalar_select %p24, 0, %s23
    %s26 = sadd.s32 1, %s15
    %s27 = scalar_select %p24, %s26, %s15
    %p28 = scmp.ge.s32.totalorder %s27, 1
    %s29 = scalar_select %p28, 0, %s27
    %s30 = sadd.s32 1, %s14
    %s31 = scalar_select %p28, %s30, %s14
    %p32 = scmp.ge.s32.totalorder %s31, 1
    %s33 = scalar_select %p32, 0, %s31
    %p34 = scmp.eq.s32.totalorder %s16, 1
    %p35 = scmp.eq.s32.totalorder %s16, 2
    %s36 = scalar_select %p35, 1, %s16
    %s37 = scalar_select %p34, 2, %s36
    %s38 = sadd.s32 %s37, %s15
    %p39 = scmp.eq.s32.totalorder %s25, 1
    %p40 = scmp.eq.s32.totalorder %s25, 2
    %s41 = scalar_select %p40, 1, %s25
    %s42 = scalar_select %p39, 2, %s41
    %s43 = sadd.s32 %s42, %s29
    %s44 = ssub.s32 %s14, %s33
    %s45 = ssub.s32 %s38, %s43
    %s46 = sor.u32 %s44, %s45
    %p47 = scmp.eq.s32.totalorder %s46, 0
    %s49 = sadd.s32 %s48, 1
    %s50 = scalar_select %p47, %s48, %s49
    %p53 = pneg %p47
    %p54 = scmp.eq.s32.totalorder %s7, 3
    %p55 = por %p53, %p54
    %p56 = scmp.ne.s32.totalorder %s48, %s51
    %p57 = scmp.eq.s32.totalorder %s7, 0
    %p58 = por %p56, %p57
    %p59 = scmp.ne.s32.totalorder %s48, %s51
    %p60 = scmp.eq.s32.totalorder %s12, 3
    %p61 = por %p59, %p60
    %p62 = scmp.ne.s32.totalorder %s51, %s52
    %p63 = scmp.eq.s32.totalorder %s12, 0
    %p64 = por %p62, %p63
    %p65 = scmp.ne.s32.totalorder %s51, %s52
    %p66 = scmp.eq.s32.totalorder %s13, 3
    %p67 = por %p65, %p66
    %p69 = scmp.ne.s32.totalorder %s52, %s68
    %p70 = scmp.eq.s32.totalorder %s13, 0
    %p71 = por %p69, %p70
    %s72 = sadd.s32 %s16, %s15
    %s73 = sadd.s32 %s25, %s29
    %s74 = ssub.s32 %s14, %s33
    %s75 = ssub.s32 %s72, %s73
    %s76 = sor.u32 %s74, %s75
    %p77 = scmp.eq.s32.totalorder %s76, 0
    %s79 = sadd.s32 %s78, 1
    %s80 = scalar_select %p77, %s78, %s79
    %p83 = pneg %p77
    %p84 = scmp.eq.s32.totalorder %s7, 3
    %p85 = por %p83, %p84
    %p86 = scmp.ne.s32.totalorder %s78, %s81
    %p87 = scmp.eq.s32.totalorder %s7, 0
    %p88 = por %p86, %p87
    %p89 = scmp.ne.s32.totalorder %s78, %s81
    %p90 = scmp.eq.s32.totalorder %s12, 3
    %p91 = por %p89, %p90
    %p92 = scmp.ne.s32.totalorder %s81, %s82
    %p93 = scmp.eq.s32.totalorder %s12, 0
    %p94 = por %p92, %p93
    %p95 = scmp.ne.s32.totalorder %s81, %s82
    %p96 = scmp.eq.s32.totalorder %s13, 3
    %p97 = por %p95, %p96
    %p99 = scmp.ne.s32.totalorder %s82, %s98
    %p100 = scmp.eq.s32.totalorder %s13, 0
    %p101 = por %p99, %p100
    %p102 = scmp.le.s32.totalorder 1, %s7
    %p103 = scmp.lt.s32.totalorder %s7, 5
    %p104 = pnand %p102, %p103
    %p105 = pneg %p104
    // Predicated region
    $region9: #{recode_alphabet.1} parent=5 // pred_check
      _
    $region10: #{recode_alphabet.1} parent=5 // pred_check_branch
      %107 = sbr.rel (%p104) target = $region12
    $region11: #{recode_alphabet.1} parent=5 // pred_region
      %s108 = ssub.s32 %s7, 1
    $region12: #{recode_alphabet.1} parent=5 // pred_fallthru
      _
    %p109 = scmp.lt.s32.totalorder %s7, 4
    // Predicated region
    $region13: #{recode_alphabet.1} parent=5 // pred_check
      %p110 = pneg %p109
    $region14: #{recode_alphabet.1} parent=5 // pred_check_branch
      %112 = sbr.rel (%p110) target = $region16
    $region15: #{recode_alphabet.1} parent=5 // pred_region
      // Predicated region
      $region17: #{recode_alphabet.1} parent=15 // pred_check
        %p113 = pneg %p58
      $region18: #{recode_alphabet.1} parent=15 // pred_check_branch
        %115 = sbr.rel (%p113) target = $region20
      $region19: #{recode_alphabet.1} parent=15 // pred_region
        %p116 = scmp.eq.s32.totalorder %s16, 1
        %p117 = scmp.eq.s32.totalorder %s16, 2
        %s118 = scalar_select %p117, 1, %s16
        %s119 = scalar_select %p116, 2, %s118
        %s120 = sadd.s32 %s119, %s15
        %s121 = smul.u32 2, %s120
        %p122 = scmp.lt.s32.totalorder %s14, 0
        %s123 = scalar_select %p122, %s14, 0
        %p124 = scmp.lt.s32.totalorder %s121, 7
        %s125 = scalar_select %p124, %s121, 7
        %s126 = smul.addr %s123, 8
        %s127 = sadd.s32 %s125, %s126
        %s128 = smul.addr %s127, 2
        %s129 = scalar_lea.vmem %s0, %s128
        %p130 = scmp.eq.s32.totalorder %s16, 1
        %p131 = scmp.eq.s32.totalorder %s16, 2
        %s132 = scalar_select %p131, 1, %s16
        %s133 = scalar_select %p130, 2, %s132
        %s134 = sadd.s32 %s133, %s15
        %s135 = smul.u32 2, %s134
      $region20: #{recode_alphabet.1} parent=15 // pred_fallthru
        _
    $region16: #{recode_alphabet.1} parent=5 // pred_fallthru
      _
    %p136 = scmp.le.s32.totalorder 1, %s7
    %p137 = scmp.lt.s32.totalorder %s7, 5
    %p138 = pnand %p136, %p137
    %p139 = pneg %p138
    // Predicated region
    $region21: #{recode_alphabet.1} parent=5 // pred_check
      _
    $region22: #{recode_alphabet.1} parent=5 // pred_check_branch
      %141 = sbr.rel (%p138) target = $region24
    $region23: #{recode_alphabet.1} parent=5 // pred_region
      %s142 = ssub.s32 %s7, 1
      %p143 = scmp.eq.s32.totalorder %s19, 1
      %p144 = scmp.eq.s32.totalorder %s19, 2
      %s145 = scalar_select %p144, 1, %s19
      %s146 = scalar_select %p143, 2, %s145
      %s147 = sadd.s32 %s146, %s18
      %s148 = smul.u32 2, %s147
      %p149 = scmp.lt.s32.totalorder %s17, 0
      %s150 = scalar_select %p149, %s17, 0
      %p151 = scmp.lt.s32.totalorder %s148, 7
      %s152 = scalar_select %p151, %s148, 7
      %s153 = smul.addr %s150, 8
      %s154 = sadd.s32 %s152, %s153
      %s155 = smul.addr %s154, 2
      %s156 = scalar_lea.vmem %s0, %s155
      %p157 = pneg %p64
      %p158 = pneg %p61
      %p159 = pneg %p94
      %p160 = pneg %p91
      %s161 = sadd.s32 %s19, %s18
      %s162 = smul.u32 2, %s161
      %p163 = scmp.lt.s32.totalorder %s17, 0
      %s164 = scalar_select %p163, %s17, 0
      %p165 = scmp.lt.s32.totalorder %s162, 7
      %s166 = scalar_select %p165, %s162, 7
      %s167 = smul.addr %s164, 8
      %s168 = sadd.s32 %s166, %s167
      %s169 = smul.addr %s168, 2
      %s170 = scalar_lea.vmem %s1, %s169
      %p171 = scmp.eq.s32.totalorder %s19, 1
      %p172 = scmp.eq.s32.totalorder %s19, 2
      %s173 = scalar_select %p172, 1, %s19
      %s174 = scalar_select %p171, 2, %s173
      %s175 = sadd.s32 %s174, %s18
      %s176 = smul.u32 2, %s175
      %p177 = scmp.lt.s32.totalorder %s17, 0
      %s178 = scalar_select %p177, %s17, 0
      %p179 = scmp.lt.s32.totalorder %s176, 7
      %s180 = scalar_select %p179, %s176, 7
      %s181 = smul.addr %s178, 8
      %s182 = sadd.s32 %s180, %s181
      %s183 = smul.addr %s182, 2
      %s184 = scalar_lea.vmem %s0, %s183
      %p185 = scmp.eq.s32.totalorder %s19, 1
      %p186 = scmp.eq.s32.totalorder %s19, 2
      %s187 = scalar_select %p186, 1, %s19
      %s188 = scalar_select %p185, 2, %s187
      %s189 = sadd.s32 %s188, %s18
      %s190 = smul.u32 2, %s189
      %s191 = sadd.s32 %s19, %s18
      %s192 = smul.u32 2, %s191
      %p193 = scmp.lt.s32.totalorder %s17, 0
      %s194 = scalar_select %p193, %s17, 0
      %p195 = scmp.lt.s32.totalorder %s192, 7
      %s196 = scalar_select %p195, %s192, 7
      %s197 = smul.addr %s194, 8
      %s198 = sadd.s32 %s196, %s197
      %s199 = smul.addr %s198, 2
      %s200 = scalar_lea.vmem %s1, %s199
      %s201 = sadd.s32 %s19, %s18
      %s202 = smul.u32 2, %s201
      %v203 = vld [vmem:[%s184] sm:$0xf]
      %204 = vst [vmem:[%s200] sm:$0xf] %v203
      %s205 = sadd.s32 %s19, %s18
      %s206 = smul.u32 2, %s205
      %p207 = scmp.lt.s32.totalorder %s17, 0
      %s208 = scalar_select %p207, %s17, 0
      %p209 = scmp.lt.s32.totalorder %s206, 7
      %s210 = scalar_select %p209, %s206, 7
      %s211 = smul.addr %s208, 8
      %s212 = sadd.s32 %s210, %s211
      %s213 = smul.addr %s212, 2
      %s214 = scalar_lea.vmem %s1, %s213
      // Predicated region
      $region25: #{recode_alphabet.1} parent=23 // pred_check
        %p215 = pneg %p91
      $region26: #{recode_alphabet.1} parent=23 // pred_check_branch
        %217 = sbr.rel (%p215) target = $region28
      $region27: #{recode_alphabet.1} parent=23 // pred_region
        %s218 = sadd.s32 %s19, %s18
        %s219 = smul.u32 2, %s218
      $region28: #{recode_alphabet.1} parent=23 // pred_fallthru
        _
    $region24: #{recode_alphabet.1} parent=5 // pred_fallthru
      _
    %p220 = scmp.le.s32.totalorder 2, %s7
    // Predicated region
    $region29: #{recode_alphabet.1} parent=5 // pred_check
      %p221 = pneg %p220
    $region30: #{recode_alphabet.1} parent=5 // pred_check_branch
      %223 = sbr.rel (%p221) target = $region32
    $region31: #{recode_alphabet.1} parent=5 // pred_region
      %s224 = ssub.s32 %s7, 2
      // Predicated region
      $region33: #{recode_alphabet.1} parent=31 // pred_check
        %p225 = pneg %p97
      $region34: #{recode_alphabet.1} parent=31 // pred_check_branch
        %227 = sbr.rel (%p225) target = $region36
      $region35: #{recode_alphabet.1} parent=31 // pred_region
        %s228 = sadd.s32 %s22, %s21
        %s229 = smul.u32 2, %s228
        %p230 = scmp.lt.s32.totalorder %s20, 0
        %s231 = scalar_select %p230, %s20, 0
        %p232 = scmp.lt.s32.totalorder %s229, 7
        %s233 = scalar_select %p232, %s229, 7
        %s234 = smul.addr %s231, 8
        %s235 = sadd.s32 %s233, %s234
        %s236 = smul.addr %s235, 2
        %s237 = scalar_lea.vmem %s1, %s236
      $region36: #{recode_alphabet.1} parent=31 // pred_fallthru
        _
    $region32: #{recode_alphabet.1} parent=5 // pred_fallthru
      _
  $region6: #{recode_alphabet.1} parent=0 // loop_footer
    %s11 = sadd.s32 1, %s7
  $region7: #{recode_alphabet.1} parent=0 // loop_footer_branch
    %6 = sbr.rel target = $region3
  $region8: #{recode_alphabet.1} parent=0 // loop_exit
    _

</llo_original>
